<compile_context>
chip_gen: v7x
topology: tpu7x:2x2x1
jax: 0.10.0
libtpu: 0.0.40
codegen_flags: <defaults>
</compile_context>

<pallas_src>
import jax
import jax.numpy as jnp
from jax import lax
from jax.experimental import pallas as pl
from jax.experimental.pallas import tpu as pltpu


def _round_up(x: int, m: int) -> int:
    return (x + m - 1) // m * m


def _pick_tile(dim: int, align: int, max_tile: int):
    """Pick (tile, padded_dim) that minimizes padding waste (prefers big tiles)."""
    aligned = _round_up(dim, align)
    if aligned <= max_tile:
        return aligned, aligned
    best = None  # (tile, padded, waste)
    t = max_tile
    while t >= align:
        padded = _round_up(dim, t)
        waste = padded - dim
        if best is None or waste < best[2]:
            best = (t, padded, waste)
        t -= align
    return best[0], best[1]


def _vmem_capacity_bytes() -> int:
    """Generation-aware VMEM size; conservative fallback if the query fails."""
    try:
        return int(pltpu.get_tpu_info().vmem_capacity_bytes)
    except Exception:
        return 64 * 1024 * 1024  # v7x per-TC VMEM (smallest of v5e/v6e/v7x)


# -----------------------------------------------------------------------------
# Kernels
# -----------------------------------------------------------------------------
def _resident_kernel(x_ref, w_ref, b_ref, o_ref):
    """Weight fully resident in VMEM: one dot + bias + exact sigmoid per M tile.

    x_ref: (TM, Kp) bf16, w_ref: (Kp, Np) bf16 (constant index map -> DMA'd
    once), b_ref: (1, Np) f32, o_ref: (TM, Np) f32.
    """
    z = lax.dot_general(
        x_ref[...],
        w_ref[...],
        dimension_numbers=(((1,), (0,)), ((), ())),   # x @ W_kmajor, no transpose
        preferred_element_type=jnp.float32,
    ) + b_ref[...]
    o_ref[...] = (1.0 / (1.0 + jnp.exp(-z))).astype(o_ref.dtype)


def _tiled_kernel(x_ref, w_ref, b_ref, o_ref):
    """Tiled fallback: accumulate straight into the resident f32 output block.

    Grid axes: (j = N tiles, i = M tiles, k = K tiles); k innermost.
    x_ref: (TM, TK) bf16, w_ref: (TK, TN) bf16 (K-major), b_ref: (1, TN) f32.
    """
    k = pl.program_id(2)

    @pl.when(k == 0)
    def _():
        o_ref[...] = jnp.zeros_like(o_ref)

    o_ref[...] += lax.dot_general(
        x_ref[...],
        w_ref[...],
        dimension_numbers=(((1,), (0,)), ((), ())),   # no transpose on MXU path
        preferred_element_type=jnp.float32,
    )

    @pl.when(k == pl.num_programs(2) - 1)
    def _():
        z = o_ref[...] + b_ref[...]
        o_ref[...] = (1.0 / (1.0 + jnp.exp(-z))).astype(o_ref.dtype)


# -----------------------------------------------------------------------------
# Parameter prep (done ONCE, not per forward call)
# -----------------------------------------------------------------------------
def prepare_params(weight, bias, *, tk_max=1024, tn_max=512):
    """Pad + cast + transpose the PyTorch-layout parameters once at init.

    weight: (n_out, n_inp) f32  ->  (Kp, Np) bf16, K-major
    bias:   (n_out,)       f32  ->  (1, Np)  f32
    """
    n_out, n_inp = weight.shape
    _, Kp = _pick_tile(n_inp, 128, tk_max)
    _, Np = _pick_tile(n_out, 128, tn_max)
    w_t = jnp.zeros((Kp, Np), jnp.bfloat16).at[:n_inp, :n_out].set(
        weight.T.astype(jnp.bfloat16))
    b_p = jnp.zeros((1, Np), jnp.float32).at[0, :n_out].set(
        bias.astype(jnp.float32))
    return w_t, b_p


# -----------------------------------------------------------------------------
# Forward
# -----------------------------------------------------------------------------
def net_forward(x, w_t, b_p, n_out, *, tm_max=512):
    """Equivalent of Net.forward: sigmoid(x @ weight.T + bias).

    x:   (..., n_inp) float32
    w_t: (Kp, Np)     bfloat16   (from prepare_params; K-major, padded)
    b_p: (1, Np)      float32    (from prepare_params; padded)
    returns (..., n_out) float32
    """
    Kp, Np = w_t.shape
    n_inp = x.shape[-1]
    lead = x.shape[:-1]
    x2 = x.reshape(-1, n_inp)
    B = x2.shape[0]

    phys = _vmem_capacity_bytes()
    budget = int(phys * 0.55)            # tile plan target: >=25% VMEM headroom
    vmem_limit = int(phys * 0.8)         # generation-aware scoped-VMEM limit

    # ---- M tile (minimize padding waste) ----
    TM0, Mp0 = _pick_tile(B, 16, tm_max)

    # ---- residency decision: can the whole bf16 weight live in VMEM? ----
    def resident_bytes(tm):
        # Conservative: assume 2 pipeline buffers for every operand.
        return (2 * tm * Kp * 2      # x tile (bf16)
                + 2 * Kp * Np * 2    # resident weight (bf16)
                + 2 * tm * Np * 4    # output tile (f32)
                + 2 * Np * 4)        # bias (f32)

    use_resident, TM, Mp = False, TM0, Mp0
    tm = TM0
    while tm >= 16:
        if resident_bytes(tm) <= budget:
            use_resident, TM, Mp = True, tm, _round_up(B, tm)
            break
        if tm == 16:
            break
        tm = max(16, _round_up(tm // 2, 16))

    # v7x has 2 TensorCores sharded over "parallel" axes: make sure the M axis
    # has >=2 iterations when the (padded) batch allows it.
    if use_resident and Mp // TM == 1 and Mp >= 32 and Mp % 32 == 0:
        TM = Mp // 2

    # ---- per-call work: only pad + cast the activations ----
    xb = jnp.zeros((Mp, Kp), jnp.bfloat16).at[:B, :n_inp].set(
        x2.astype(jnp.bfloat16))

    if use_resident:
        # Weight + bias DMA'd once (constant index map); x read once, out
        # written once -> streaming-roofline HBM traffic.
        grid = (Mp // TM,)
        out_padded = pl.pallas_call(
            _resident_kernel,
            out_shape=jax.ShapeDtypeStruct((Mp, Np), jnp.float32),
            grid_spec=pltpu.PrefetchScalarGridSpec(
                num_scalar_prefetch=0,
                grid=grid,
                in_specs=[
                    pl.BlockSpec((TM, Kp), lambda i: (i, 0)),   # x tiles
                    pl.BlockSpec((Kp, Np), lambda i: (0, 0)),   # W resident
                    pl.BlockSpec((1, Np), lambda i: (0, 0)),    # bias resident
                ],
                out_specs=pl.BlockSpec((TM, Np), lambda i: (i, 0)),
            ),
            compiler_params=pltpu.CompilerParams(
                dimension_semantics=("parallel",),
                vmem_limit_bytes=vmem_limit,
            ),
        )(xb, w_t, b_p)
    else:
        # Tiled fallback for very large layers. Larger tiles than before
        # (TM=512, TN<=512, TK<=1024) and no scratch accumulator: accumulate
        # directly into the resident f32 output block.
        TK = Kp if Kp <= 1024 else max(
            t for t in (1024, 512, 256, 128) if Kp % t == 0)
        TN = Np if Np <= 512 else max(
            t for t in (512, 256, 128) if Np % t == 0)
        grid = (Np // TN, Mp // TM, Kp // TK)   # N outer, M middle, K inner
        out_padded = pl.pallas_call(
            _tiled_kernel,
            out_shape=jax.ShapeDtypeStruct((Mp, Np), jnp.float32),
            grid_spec=pltpu.PrefetchScalarGridSpec(
                num_scalar_prefetch=0,
                grid=grid,
                in_specs=[
                    pl.BlockSpec((TM, TK), lambda j, i, k: (i, k)),   # x
                    pl.BlockSpec((TK, TN), lambda j, i, k: (k, j)),   # W (K-major)
                    pl.BlockSpec((1, TN), lambda j, i, k: (0, j)),    # bias
                ],
                out_specs=pl.BlockSpec((TM, TN), lambda j, i, k: (i, j)),
            ),
            compiler_params=pltpu.CompilerParams(
                dimension_semantics=("parallel", "parallel", "arbitrary"),
                vmem_limit_bytes=vmem_limit,
            ),
        )(xb, w_t, b_p)

    y = out_padded[:B, :n_out]
    return y.reshape(*lead, n_out)


def init_params(key, n_inp, n_out):
    # Deterministic init mimicking torch.nn.Linear default:
    # U(-1/sqrt(n_inp), 1/sqrt(n_inp)) for both weight and bias.
    kw, kb = jax.random.split(key)
    bound = 1.0 / jnp.sqrt(jnp.float32(n_inp))
    weight = jax.random.uniform(kw, (n_out, n_inp), jnp.float32, -bound, bound)
    bias = jax.random.uniform(kb, (n_out,), jnp.float32, -bound, bound)
    return weight, bias


if __name__ == "__main__":
    key = jax.random.PRNGKey(0)
    k_x, k_p = jax.random.split(key)

    B, n_inp, n_out = 8, 32, 16
    x = jax.random.normal(k_x, (B, n_inp), jnp.float32)
    weight, bias = init_params(k_p, n_inp, n_out)

    # One-time parameter prep (padded, bf16, K-major) -- hoisted out of the
    # per-call path as required by the perf review.
    w_t, b_p = prepare_params(weight, bias)

    fwd = jax.jit(net_forward, static_argnames=("n_out",))
    y = fwd(x, w_t, b_p, n_out=n_out)
    jax.block_until_ready(y)

    # Reference check in plain JAX (same math as torch.sigmoid(fc1(x))).
    # bf16 MXU inputs -> slightly loosened tolerance; sigmoid is exact.
    y_ref = jax.nn.sigmoid(x @ weight.T + bias)
    assert y.shape == (B, n_out)
    err = float(jnp.max(jnp.abs(y - y_ref)))
    assert err < 2e-2, err

    print("KERNEL_OK")
</pallas_src>

<mosaic_0001>
module attributes {stable_mosaic.version = 11 : i64} {
  func.func @_resident_kernel(%arg0: i32, %arg1: memref<16x128xbf16, #tpu.memory_space<vmem>>, %arg2: memref<128x128xbf16, #tpu.memory_space<vmem>>, %arg3: memref<1x128xf32, #tpu.memory_space<vmem>>, %arg4: memref<16x128xf32, #tpu.memory_space<vmem>>) attributes {dimension_semantics = [#tpu.dimension_semantics<parallel>], iteration_bounds = array<i64: 1>, scalar_prefetch = 0 : i64, scratch_operands = 0 : i64, tpu.core_type = #tpu.core_type<tc>, window_params = [{transform_indices = @transform_0, window_bounds = array<i64: 16, 128>}, {pipeline_mode = #tpu.pipeline_mode<synchronous>, transform_indices = @transform_1, window_bounds = array<i64: 128, 128>}, {pipeline_mode = #tpu.pipeline_mode<synchronous>, transform_indices = @transform_2, window_bounds = array<i64: 1, 128>}, {transform_indices = @transform_3, window_bounds = array<i64: 16, 128>}]} {
    %c0 = arith.constant 0 : index
    %c0_0 = arith.constant 0 : index
    %0 = vector.load %arg1[%c0, %c0_0] : memref<16x128xbf16, #tpu.memory_space<vmem>>, vector<16x128xbf16>
    %c0_1 = arith.constant 0 : index
    %c0_2 = arith.constant 0 : index
    %1 = vector.load %arg2[%c0_1, %c0_2] : memref<128x128xbf16, #tpu.memory_space<vmem>>, vector<128x128xbf16>
    %cst = arith.constant dense<0.000000e+00> : vector<16x128xf32>
    %2 = tpu.matmul %0, %1, %cst {dimension_numbers = #tpu.dot_dimension_numbers<[1], [0], [0], [1], [0, 0, 1, 1], [], []>} : vector<16x128xbf16>, vector<128x128xbf16>, vector<16x128xf32> -> vector<16x128xf32>
    %c0_3 = arith.constant 0 : index
    %c0_4 = arith.constant 0 : index
    %3 = vector.load %arg3[%c0_3, %c0_4] : memref<1x128xf32, #tpu.memory_space<vmem>>, vector<1x128xf32>
    %4 = vector.broadcast %3 : vector<1x128xf32> to vector<16x128xf32>
    %5 = arith.addf %2, %4 : vector<16x128xf32>
    %cst_5 = arith.constant 0.000000e+00 : f32
    %6 = vector.broadcast %cst_5 : f32 to vector<16x128xf32>
    %7 = arith.subf %6, %5 : vector<16x128xf32>
    %8 = math.exp %7 : vector<16x128xf32>
    %cst_6 = arith.constant 1.000000e+00 : f32
    %9 = vector.broadcast %cst_6 : f32 to vector<16x128xf32>
    %10 = arith.addf %9, %8 : vector<16x128xf32>
    %cst_7 = arith.constant 1.000000e+00 : f32
    %11 = vector.broadcast %cst_7 : f32 to vector<16x128xf32>
    %12 = arith.divf %11, %10 : vector<16x128xf32>
    %c0_8 = arith.constant 0 : index
    %c0_9 = arith.constant 0 : index
    %13 = vector.load %arg4[%c0_8, %c0_9] : memref<16x128xf32, #tpu.memory_space<vmem>>, vector<16x128xf32>
    tpu.vector_store %arg4[%c0_8, %c0_9], %12 {strides = array<i32>} : memref<16x128xf32, #tpu.memory_space<vmem>>, vector<16x128xf32>,
    return
  }
  func.func @transform_0(%arg0: i32) -> (i32, i32) {
    %c0_i32 = arith.constant 0 : i32
    %c0_i32_0 = arith.constant 0 : i32
    return %arg0, %c0_i32 : i32, i32
  }
  func.func @transform_1(%arg0: i32) -> (i32, i32) {
    %c0_i32 = arith.constant 0 : i32
    %c0_i32_0 = arith.constant 0 : i32
    %c0_i32_1 = arith.constant 0 : i32
    return %c0_i32, %c0_i32_0 : i32, i32
  }
  func.func @transform_2(%arg0: i32) -> (i32, i32) {
    %c0_i32 = arith.constant 0 : i32
    %c0_i32_0 = arith.constant 0 : i32
    %c0_i32_1 = arith.constant 0 : i32
    return %c0_i32, %c0_i32_0 : i32, i32
  }
  func.func @transform_3(%arg0: i32) -> (i32, i32) {
    %c0_i32 = arith.constant 0 : i32
    %c0_i32_0 = arith.constant 0 : i32
    return %arg0, %c0_i32 : i32, i32
  }
}

</mosaic_0001>

<llo_original>
// kernel: net_forward.1
$region0: #{net_forward.1}
  #allocation0 [shape = 'u32[]', space=smem, size = 0x4, offset = 0x4, fixed_abs, tag = 'smem constant byte address 0x4 - core index']
  #allocation1 [shape = 'u32[144,128]{1,0:T(1,128)}', space=vmem, size = 0x12000, scoped, tag = 'internal scratch']
  %s0 = inlined_call_operand.vmem [shape: bf16[16,128], index: 0, kind: input, shape index: {}]
  %s1 = inlined_call_operand.hbm [shape: bf16[128,128], index: 1, kind: input, shape index: {}]
  %s2 = inlined_call_operand.vmem [shape: f32[1,128], index: 2, kind: input, shape index: {}]
  %s3 = inlined_call_operand.vmem [shape: f32[16,128], index: 3, kind: output, shape index: {}]
  %s4 = sld [smem:[#allocation0]]
  $region26: #{net_forward.1} parent=0
    _
  %s6 = ssub.s32 1, %s4
  %s7 = scalar_select 0, %s6, %s4
  $region1: #{net_forward.1} parent=0
    #allocation2 [shape = 'u8[32768]{0}', space=vmem, size = 0x8000, scoped, tag = 'input window, operand 1, single buffered']
    #allocation3 [shape = 's32[1]{0}', space=sflag, size = 0x4, scoped, tag = 'scoped memory for net_forward.1']
    %8 = vsyncpa [#allocation3], 0
    // Predicated region
    $region2: #{net_forward.1} parent=1 // pred_check
      _
    $region3: #{net_forward.1} parent=1 // pred_check_branch
      %10 = sbr.rel (0) target = $region5
    $region4: #{net_forward.1} parent=1 // pred_region
      _
    $region5: #{net_forward.1} parent=1 // pred_fallthru
      _
    // Predicated region
    $region6: #{net_forward.1} parent=1 // pred_check
      _
    $region7: #{net_forward.1} parent=1 // pred_check_branch
      %12 = sbr.rel (0) target = $region9
    $region8: #{net_forward.1} parent=1 // pred_region
      %s14 = ssub.s32 1024, 1024
      %15 = vsyncadd [#allocation3], %s14
      %s16 = sshll.u32 [#allocation2], 4
      %s17 = int_to_ptr.vmem [resolvable:$true] %s16
      %22 = dma.hbm_to_vmem [thread:$0]  %s1, 1024, %s17, [#allocation3], 64, 64, 4
    $region9: #{net_forward.1} parent=1 // pred_fallthru
      _
    // Predicated region
    $region10: #{net_forward.1} parent=1 // pred_check
      _
    $region11: #{net_forward.1} parent=1 // pred_check_branch
      %24 = sbr.rel (0) target = $region13
    $region12: #{net_forward.1} parent=1 // pred_region
      _
    $region13: #{net_forward.1} parent=1 // pred_fallthru
      _
    // Predicated region
    $region14: #{net_forward.1} parent=1 // pred_check
      _
    $region15: #{net_forward.1} parent=1 // pred_check_branch
      %26 = sbr.rel (0) target = $region17
    $region16: #{net_forward.1} parent=1 // pred_region
      %27 = dma.done [#allocation3], 1024
    $region17: #{net_forward.1} parent=1 // pred_fallthru
      _
    %v29 = vld [vmem:[%s0] sm:$0xf]
    %v30 = vld [vmem:[%s0 + $0x4] sm:$0xf]
    %v31 = vld [vmem:[#allocation2] sm:$0xf]
    %v32 = vld [vmem:[#allocation2 + $0x4] sm:$0xf]
    %v33 = vld [vmem:[#allocation2 + $0x8] sm:$0xf]
    %v34 = vld [vmem:[#allocation2 + $0xc] sm:$0xf]
    %v35 = vld [vmem:[#allocation2 + $0x10] sm:$0xf]
    %v36 = vld [vmem:[#allocation2 + $0x14] sm:$0xf]
    %v37 = vld [vmem:[#allocation2 + $0x18] sm:$0xf]
    %v38 = vld [vmem:[#allocation2 + $0x1c] sm:$0xf]
    %v39 = vld [vmem:[#allocation2 + $0x20] sm:$0xf]
    %v40 = vld [vmem:[#allocation2 + $0x24] sm:$0xf]
    %v41 = vld [vmem:[#allocation2 + $0x28] sm:$0xf]
    %v42 = vld [vmem:[#allocation2 + $0x2c] sm:$0xf]
    %v43 = vld [vmem:[#allocation2 + $0x30] sm:$0xf]
    %v44 = vld [vmem:[#allocation2 + $0x34] sm:$0xf]
    %v45 = vld [vmem:[#allocation2 + $0x38] sm:$0xf]
    %v46 = vld [vmem:[#allocation2 + $0x3c] sm:$0xf]
    %v47 = vld [vmem:[%s2] sm:$0x1]
    %v49 = vlaneseq
    %v50 = vshrl.u32 %v49, 7
    %v51 = vsub.s32 0, %v50
    %v52 = vrot.slane %v47, %v51
    %v56 = vunpack.c.l.b16 %v29
    %v57 = vunpack.c.l.b16 %v30
    %v58 = vpack.c.b16 %v57, %v56
    %v76 = vunpack.c.l.b16 %v31
    %v77 = vunpack.c.l.b16 %v32
    %v78 = vunpack.c.l.b16 %v33
    %v79 = vunpack.c.l.b16 %v34
    %v80 = vunpack.c.l.b16 %v35
    %v81 = vunpack.c.l.b16 %v36
    %v82 = vunpack.c.l.b16 %v37
    %v83 = vunpack.c.l.b16 %v38
    %v84 = vunpack.c.l.b16 %v39
    %v85 = vunpack.c.l.b16 %v40
    %v86 = vunpack.c.l.b16 %v41
    %v87 = vunpack.c.l.b16 %v42
    %v88 = vunpack.c.l.b16 %v43
    %v89 = vunpack.c.l.b16 %v44
    %v90 = vunpack.c.l.b16 %v45
    %v91 = vunpack.c.l.b16 %v46
    %v92 = vpack.c.b16 %v77, %v76
    %v93 = vpack.c.b16 %v79, %v78
    %v94 = vpack.c.b16 %v81, %v80
    %v95 = vpack.c.b16 %v83, %v82
    %v96 = vpack.c.b16 %v85, %v84
    %v97 = vpack.c.b16 %v87, %v86
    %v98 = vpack.c.b16 %v89, %v88
    %v99 = vpack.c.b16 %v91, %v90
    %108 = vmatprep.subr.bf16.mxu0 0
    %109 = vmatpush1.bf16.msra.mxu0 %v92
    %110 = vmatprep.subr.bf16.mxu0 0
    %111 = vmatpush1.bf16.msra.mxu0 %v93
    %112 = vmatprep.subr.bf16.mxu0 0
    %113 = vmatpush1.bf16.msra.mxu0 %v94
    %114 = vmatprep.subr.bf16.mxu0 0
    %115 = vmatpush1.bf16.msra.mxu0 %v95
    %116 = vmatprep.subr.bf16.mxu0 0
    %117 = vmatpush1.bf16.msra.mxu0 %v96
    %118 = vmatprep.subr.bf16.mxu0 0
    %119 = vmatpush1.bf16.msra.mxu0 %v97
    %120 = vmatprep.subr.bf16.mxu0 0
    %121 = vmatpush1.bf16.msra.mxu0 %v98
    %122 = vmatprep.subr.bf16.mxu0 0
    %123 = vmatpush1.bf16.msra.mxu0 %v99
    %124 = vmatprep.subr.bf16.mxu0 0
    %125 = vmatpush1.bf16.msra.mxu0 0
    %126 = vmatprep.subr.bf16.mxu0 0
    %127 = vmatpush1.bf16.msra.mxu0 0
    %128 = vmatprep.subr.bf16.mxu0 0
    %129 = vmatpush1.bf16.msra.mxu0 0
    %130 = vmatprep.subr.bf16.mxu0 0
    %131 = vmatpush1.bf16.msra.mxu0 0
    %132 = vmatprep.subr.bf16.mxu0 0
    %133 = vmatpush1.bf16.msra.mxu0 0
    %134 = vmatprep.subr.bf16.mxu0 0
    %135 = vmatpush1.bf16.msra.mxu0 0
    %136 = vmatprep.subr.bf16.mxu0 0
    %137 = vmatpush1.bf16.msra.mxu0 0
    %138 = vmatprep.subr.bf16.mxu0 0
    %139 = vmatpush1.bf16.msra.mxu0 0
    %140 = vmatprep.mubr.bf16.mxu0 0
    %141 = vmatmul.mubr.bf16.gmra.mrb[0].mxu0 %v58
    %v142 = vpop.f32.mrb[0].mxu0
    %v143 = vadd.f32 %v52, %v142
    %v144 = vpop.f32.mrb[0].mxu0
    %v145 = vpop.f32.mrb[0].mxu0
    %v146 = vadd.f32 %v52, %v145
    %v147 = vpop.f32.mrb[0].mxu0
    %148 = vdwg.mxu0
    %v149 = vsub.f32 0.0, %v143
    %v150 = vsub.f32 0.0, %v146
    %v151 = vmul.f32 %v149, 1.442695
    %v152 = vpow.pop %v151
    %v153 = vmul.f32 %v150, 1.442695
    %v154 = vpow.pop %v153
    %v155 = vadd.f32 %v152, 1.0
    %v156 = vadd.f32 %v154, 1.0
    %v157 = vrcp.pop %v155
    %v158 = vmul.f32 1.0, %v157
    %v159 = vrcp.pop %v156
    %v160 = vmul.f32 1.0, %v159
    %161 = vst [vmem:[%s3] sm:$0xff] %v158
    %162 = vst [vmem:[%s3 + $0x8] sm:$0xff] %v160
    // Predicated region
    $region18: #{net_forward.1} parent=1 // pred_check
      _
    $region19: #{net_forward.1} parent=1 // pred_check_branch
      %164 = sbr.rel (0) target = $region21
    $region20: #{net_forward.1} parent=1 // pred_region
      _
    $region21: #{net_forward.1} parent=1 // pred_fallthru
      _
    // Predicated region
    $region22: #{net_forward.1} parent=1 // pred_check
      _
    $region23: #{net_forward.1} parent=1 // pred_check_branch
      %166 = sbr.rel (0) target = $region25
    $region24: #{net_forward.1} parent=1 // pred_region
      _
    $region25: #{net_forward.1} parent=1 // pred_fallthru
      _
    %167 = vsyncpa [#allocation3], 1

</llo_original>
